<compile_context>
chip_gen: v5e
topology: v5e:2x2
jax: 0.10.0
libtpu: 0.0.40
codegen_flags: <defaults>
</compile_context>

<pallas_src>
import jax
import jax.numpy as jnp
from jax.experimental import pallas as pl
from jax.experimental.pallas import tpu as pltpu


def _round_up(x, m):
    return (x + m - 1) // m * m


def _perceptron_kernel(x_ref, w_ref, b_ref, o_ref):
    # x_ref: (TILE_N, D) VMEM (streamed)   w_ref: (1, D) VMEM (resident)
    # b_ref: (1,)        SMEM scalar       o_ref: (1, TILE_N) VMEM (lane-dense)
    x = x_ref[...]
    w = w_ref[...]
    b = b_ref[0]
    # Contract over D with "transposed-RHS" dimension numbers: the MXU handles
    # this natively, so no full (TILE_N, D) tile transpose is materialized and
    # the result lands directly on the lane axis as (1, TILE_N).
    acc = jax.lax.dot_general(
        w, x,
        dimension_numbers=(((1,), (1,)), ((), ())),
        preferred_element_type=jnp.float32,
    )
    o_ref[...] = (acc + b).astype(o_ref.dtype)


def _choose_tile_n(d, itemsize):
    """Pick TILE_N so each streamed x block is ~1-2 MiB of HBM traffic while the
    (lane-padded) VMEM buffers stay within a budget that is safe on every
    generation (v5e/v6e: 128 MiB physical; v7x: 64 MiB physical / 32 MiB scoped)."""
    target_hbm_bytes = 2 * 1024 * 1024
    tn = max(1024, _round_up(target_hbm_bytes // max(d * itemsize, 1), 128))
    # In VMEM the minor dim is lane-padded to a multiple of 128.
    d_vmem = max(_round_up(d, 128), 128)
    n_x_buffers = 3                      # worst case: pl.Buffered(3) on the x stream
    x_vmem_budget = 18 * 1024 * 1024     # headroom under the 32 MiB vmem_limit_bytes
    cap = (x_vmem_budget // (n_x_buffers * d_vmem * itemsize)) // 128 * 128
    return min(tn, max(cap, 128))


def _make_x_spec(tn, d, buffers):
    index_map = lambda i: (i, 0)
    if buffers > 2:
        try:
            return pl.BlockSpec((tn, d), index_map, pipeline_mode=pl.Buffered(buffers))
        except TypeError:
            pass  # jax version without pipeline_mode: fall back to default double-buffer
    return pl.BlockSpec((tn, d), index_map)


def perceptron_forward(x, weight, bias, *, tile_n=None, compute_dtype=None,
                       min_rows_for_pallas=4096):
    """Forward pass of nn.Linear(input_dim, 1): y = x @ weight.T + bias.

    x:      (N, D)   weight: (1, D) (PyTorch layout, used as-is)   bias: (1,)
    returns (N, 1) float32.
    compute_dtype: optional (e.g. jnp.bfloat16) to halve streamed HBM bytes;
                   accumulation stays f32. Default None == exact f32 numerics.
    """
    n, d = x.shape
    assert weight.shape == (1, d)
    assert bias.shape == (1,)

    # Small-N fast path: pallas_call launch + single-tile pipeline overhead dwarfs
    # the work for tiny batches; XLA fuses this trivially.
    if n < min_rows_for_pallas:
        return (x @ weight.T + bias).astype(jnp.float32)

    if compute_dtype is not None:
        x = x.astype(compute_dtype)
        weight = weight.astype(compute_dtype)
    bias = bias.astype(jnp.float32)
    itemsize = jnp.dtype(x.dtype).itemsize

    tn = tile_n if tile_n is not None else _choose_tile_n(d, itemsize)
    if tn >= n:
        # Single tile: pad rows to the sublane/packing multiple; blocks then cover
        # the full (padded) arrays, so no 128-divisibility requirement applies.
        tn = _round_up(max(n, 1), 16)
        num_tiles = 1
    else:
        assert tn % 128 == 0, "tile_n must be a multiple of 128 when N > tile_n"
        num_tiles = int(pl.cdiv(n, tn))
    padded_n = num_tiles * tn

    cost = pl.CostEstimate(
        flops=2 * n * d,
        bytes_accessed=n * d * itemsize + d * itemsize + n * 4,
        transcendentals=0,
    )

    out_flat = pl.pallas_call(
        _perceptron_kernel,
        out_shape=jax.ShapeDtypeStruct((1, padded_n), jnp.float32),
        grid_spec=pltpu.PrefetchScalarGridSpec(
            num_scalar_prefetch=0,
            grid=(num_tiles,),
            in_specs=[
                # Streamed x row tiles (triple-buffered when the grid is long).
                _make_x_spec(tn, d, buffers=3 if num_tiles >= 3 else 2),
                # Weight: tiny, constant index_map -> stays resident in VMEM.
                pl.BlockSpec((1, d), lambda i: (0, 0)),
                # Bias: scalar in SMEM (no padded VMEM tile, no vector-load slot).
                pl.BlockSpec(memory_space=pltpu.MemorySpace.SMEM),
            ],
            # Lane-dense output: one full (1, TILE_N) row per grid step.
            out_specs=pl.BlockSpec((1, tn), lambda i: (0, i)),
        ),
        compiler_params=pltpu.CompilerParams(
            # Rows are independent -> shard grid steps across v7x's two TensorCores;
            # harmless no-op on single-TC v5e/v6e.
            dimension_semantics=("parallel",),
            # Explicit budget: safe on v7x (64 MiB physical) and above v5e's 16 MiB
            # default scoped limit.
            vmem_limit_bytes=32 * 1024 * 1024,
        ),
        cost_estimate=cost,
    )(x, weight, bias)

    # The last tile reads x rows in [n, padded_n); those values are undefined but
    # only feed output lanes that are sliced off right here (never reuse them).
    return out_flat.reshape(-1)[:n].reshape(n, 1)


if __name__ == "__main__":
    key = jax.random.PRNGKey(0)
    k_x, k_w, k_b, k_mid, k_big = jax.random.split(key, 5)

    input_dim = 32
    batch = 8

    # Parameters mimicking nn.Linear init: U(-1/sqrt(D), 1/sqrt(D)).
    bound = 1.0 / jnp.sqrt(jnp.float32(input_dim))
    weight = jax.random.uniform(k_w, (1, input_dim), jnp.float32, -bound, bound)
    bias = jax.random.uniform(k_b, (1,), jnp.float32, -bound, bound)

    # 1) Module-sized input: small-N fast path (no Pallas launch).
    x_small = jax.random.normal(k_x, (batch, input_dim), jnp.float32)
    out_small = jax.block_until_ready(perceptron_forward(x_small, weight, bias))
    ref_small = x_small @ weight.T + bias
    assert out_small.shape == (batch, 1)
    assert jnp.allclose(out_small, ref_small, atol=1e-5, rtol=1e-5)

    # 2) Same small input forced through the single-tile Pallas path.
    out_small_pl = jax.block_until_ready(
        perceptron_forward(x_small, weight, bias, min_rows_for_pallas=0))
    assert jnp.allclose(out_small_pl, ref_small, atol=1e-5, rtol=1e-5)

    # 3) Multi-tile pipelined path with a ragged tail (3 tiles of 256 rows).
    x_mid = jax.random.normal(k_mid, (600, input_dim), jnp.float32)
    out_mid = jax.block_until_ready(
        perceptron_forward(x_mid, weight, bias, tile_n=256, min_rows_for_pallas=0))
    ref_mid = x_mid @ weight.T + bias
    assert out_mid.shape == (600, 1)
    assert jnp.allclose(out_mid, ref_mid, atol=1e-5, rtol=1e-5)

    # 4) Auto tile-sizing path (~1-2 MiB HBM blocks per step) with a ragged tail.
    x_big = jax.random.normal(k_big, (20000, input_dim), jnp.float32)
    out_big = jax.block_until_ready(perceptron_forward(x_big, weight, bias))
    ref_big = x_big @ weight.T + bias
    assert out_big.shape == (20000, 1)
    assert jnp.allclose(out_big, ref_big, atol=1e-4, rtol=1e-5)

    # 5) Opt-in bf16 streaming (halves HBM bytes; f32 accumulation on the MXU).
    out_bf16 = jax.block_until_ready(
        perceptron_forward(x_mid, weight, bias, tile_n=256, min_rows_for_pallas=0,
                           compute_dtype=jnp.bfloat16))
    assert jnp.allclose(out_bf16, ref_mid, atol=5e-2, rtol=5e-2)

    print("KERNEL_OK")
</pallas_src>

<mosaic_0001>
module attributes {stable_mosaic.version = 11 : i64} {
  func.func @_perceptron_kernel(%arg0: i32, %arg1: memref<16x32xf32, #tpu.memory_space<vmem>>, %arg2: memref<1x32xf32, #tpu.memory_space<vmem>>, %arg3: memref<1xf32, #tpu.memory_space<smem>>, %arg4: memref<1x16xf32, #tpu.memory_space<vmem>>) attributes {dimension_semantics = [#tpu.dimension_semantics<parallel>], iteration_bounds = array<i64: 1>, scalar_prefetch = 0 : i64, scratch_operands = 0 : i64, tpu.core_type = #tpu.core_type<tc>, window_params = [{transform_indices = @transform_0, window_bounds = array<i64: 16, 32>}, {pipeline_mode = #tpu.pipeline_mode<synchronous>, transform_indices = @transform_1, window_bounds = array<i64: 1, 32>}, {transform_indices = @transform_2, window_bounds = array<i64: 1>}, {transform_indices = @transform_3, window_bounds = array<i64: 1, 16>}]} {
    %c0 = arith.constant 0 : index
    %c0_0 = arith.constant 0 : index
    %0 = vector.load %arg1[%c0, %c0_0] : memref<16x32xf32, #tpu.memory_space<vmem>>, vector<16x32xf32>
    %c0_1 = arith.constant 0 : index
    %c0_2 = arith.constant 0 : index
    %1 = vector.load %arg2[%c0_1, %c0_2] : memref<1x32xf32, #tpu.memory_space<vmem>>, vector<1x32xf32>
    %c0_3 = arith.constant 0 : index
    %2 = memref.load %arg3[%c0_3] : memref<1xf32, #tpu.memory_space<smem>>
    %cst = arith.constant dense<0.000000e+00> : vector<1x16xf32>
    %3 = tpu.matmul %1, %0, %cst {dimension_numbers = #tpu.dot_dimension_numbers<[1], [1], [0], [0], [0, 0, 1, 0], [], []>} : vector<1x32xf32>, vector<16x32xf32>, vector<1x16xf32> -> vector<1x16xf32>
    %4 = vector.broadcast %2 : f32 to vector<1x16xf32>
    %5 = arith.addf %3, %4 : vector<1x16xf32>
    %c0_4 = arith.constant 0 : index
    %c0_5 = arith.constant 0 : index
    %6 = vector.load %arg4[%c0_4, %c0_5] : memref<1x16xf32, #tpu.memory_space<vmem>>, vector<1x16xf32>
    tpu.vector_store %arg4[%c0_4, %c0_5], %5 {strides = array<i32>} : memref<1x16xf32, #tpu.memory_space<vmem>>, vector<1x16xf32>,
    return
  }
  func.func @transform_0(%arg0: i32) -> (i32, i32) {
    %c0_i32 = arith.constant 0 : i32
    %c0_i32_0 = arith.constant 0 : i32
    return %arg0, %c0_i32 : i32, i32
  }
  func.func @transform_1(%arg0: i32) -> (i32, i32) {
    %c0_i32 = arith.constant 0 : i32
    %c0_i32_0 = arith.constant 0 : i32
    %c0_i32_1 = arith.constant 0 : i32
    return %c0_i32, %c0_i32_0 : i32, i32
  }
  func.func @transform_2(%arg0: i32) -> i32 {
    %c0_i32 = arith.constant 0 : i32
    %c0_i32_0 = arith.constant 0 : i32
    return %c0_i32 : i32
  }
  func.func @transform_3(%arg0: i32) -> (i32, i32) {
    %c0_i32 = arith.constant 0 : i32
    %c0_i32_0 = arith.constant 0 : i32
    return %c0_i32, %arg0 : i32, i32
  }
}

</mosaic_0001>

<llo_original>
// kernel: tpu_custom_call.1
$region0: #{tpu_custom_call.1}
  #allocation0 [shape = 'u32[]', space=smem, size = 0x4, offset = 0x4, fixed_abs, tag = 'smem constant byte address 0x4 - core index']
  #allocation1 [shape = 'u32[72,128]{1,0:T(1,128)}', space=vmem, size = 0x9000, scoped, tag = 'internal scratch']
  #allocation2 [shape = 'f32[1]{0:T(128)S(6)}', space=smem, size = 0x200, scoped, tag = 'scoped memory for tpu_custom_call.1']
  %s0 = inlined_call_operand.hbm [shape: f32[8,32], index: 0, kind: input, shape index: {}]
  %s1 = inlined_call_operand.vmem [shape: f32[1,32], index: 1, kind: input, shape index: {}]
  %s2 = inlined_call_operand.<no memory space> [shape: f32[1], index: 2, kind: input, shape index: {}]
  %s3 = inlined_call_operand.hbm [shape: f32[1,16], index: 3, kind: output, shape index: {}]
  %s4 = sld [smem:[#allocation0]]
  $region26: #{tpu_custom_call.1} parent=0
    _
  %s6 = ssub.s32 1, %s4
  %s7 = scalar_select 0, %s6, %s4
  %8 = sst [smem:[#allocation2]] %s2
  $region1: #{tpu_custom_call.1} parent=0
    #allocation3 [shape = 'u8[8192]{0}', space=vmem, size = 0x2000, scoped, tag = 'input window, operand 0, single buffered']
    #allocation4 [shape = 's32[1]{0}', space=sflag, size = 0x4, scoped, tag = 'scoped memory for tpu_custom_call.1']
    #allocation5 [shape = 's32[1]{0}', space=sflag, size = 0x4, scoped, tag = 'scoped memory for tpu_custom_call.1']
    #allocation6 [shape = 'u8[512]{0}', space=vmem, size = 0x400, scoped, tag = 'output window, operand 0, single buffered']
    %9 = vsyncpa [#allocation4], 0
    %10 = vsyncpa [#allocation5], 0
    // Predicated region
    $region2: #{tpu_custom_call.1} parent=1 // pred_check
      _
    $region3: #{tpu_custom_call.1} parent=1 // pred_check_branch
      %12 = sbr.rel (0) target = $region5
    $region4: #{tpu_custom_call.1} parent=1 // pred_region
      %14 = vsyncadd [#allocation4], 128
      %s15 = sshll.u32 %s0, 4
      %s16 = int_to_ptr.hbm [resolvable:$true] %s15
      %s17 = sshll.u32 [#allocation3], 4
      %s18 = int_to_ptr.vmem [resolvable:$true] %s17
      %23 = dma.hbm_to_vmem [thread:$0]  %s16, 128, %s18, [#allocation4], 128, 128, 8
    $region5: #{tpu_custom_call.1} parent=1 // pred_fallthru
      _
    // Predicated region
    $region6: #{tpu_custom_call.1} parent=1 // pred_check
      _
    $region7: #{tpu_custom_call.1} parent=1 // pred_check_branch
      %25 = sbr.rel (0) target = $region9
    $region8: #{tpu_custom_call.1} parent=1 // pred_region
      _
    $region9: #{tpu_custom_call.1} parent=1 // pred_fallthru
      _
    // Predicated region
    $region10: #{tpu_custom_call.1} parent=1 // pred_check
      _
    $region11: #{tpu_custom_call.1} parent=1 // pred_check_branch
      %27 = sbr.rel (0) target = $region13
    $region12: #{tpu_custom_call.1} parent=1 // pred_region
      _
    $region13: #{tpu_custom_call.1} parent=1 // pred_fallthru
      _
    // Predicated region
    $region14: #{tpu_custom_call.1} parent=1 // pred_check
      _
    $region15: #{tpu_custom_call.1} parent=1 // pred_check_branch
      %29 = sbr.rel (0) target = $region17
    $region16: #{tpu_custom_call.1} parent=1 // pred_region
      %31 = dma.done [#allocation4], 256
    $region17: #{tpu_custom_call.1} parent=1 // pred_fallthru
      _
    %v32 = vld [vmem:[#allocation3] sm:$0xff]
    %v33 = vld [vmem:[#allocation3 + $0x8] sm:$0xff]
    %v34 = vld [vmem:[%s1] sm:$0x1]
    %s35 = sld [smem:[#allocation2]]
    %v36 = vstv %s35
    %vm37 = vcmask 261120
    %v39 = vsel %vm37, %v34, 0
    %v42 = vsel %vm37, %v32, 0
    %v45 = vsel %vm37, %v33, 0
    %47 = vmatpush.xpose.msra.mxu0 0.0
    %48 = vmatpush.xpose.msra.mxu0 0.0
    %49 = vmatpush.xpose.msra.mxu0 0.0
    %50 = vmatpush.xpose.msra.mxu0 0.0
    %51 = vmatpush.xpose.msra.mxu0 0.0
    %52 = vmatpush.xpose.msra.mxu0 0.0
    %53 = vmatpush.xpose.msra.mxu0 0.0
    %54 = vmatpush.xpose.msra.mxu0 0.0
    %55 = vmatpush.xpose.msra.mxu0 0.0
    %56 = vmatpush.xpose.msra.mxu0 0.0
    %57 = vmatpush.xpose.msra.mxu0 0.0
    %58 = vmatpush.xpose.msra.mxu0 0.0
    %59 = vmatpush.xpose.msra.mxu0 0.0
    %60 = vmatpush.xpose.msra.mxu0 0.0
    %61 = vmatpush.xpose.msra.mxu0 %v45
    %62 = vmatpush.xpose.msra.mxu0 %v42
    %63 = vmatmul.f32.gmra.mxu0 %v39
    %v64 = vpop.f32.mrf.mxu0
    %v65 = vadd.f32 %v36, %v64
    %66 = vdwg.mxu0
    %vm67 = vcmask 122880
    %68 = vst.msk [vmem:[#allocation6] sm:$0x1] %vm67, %v65
    // Predicated region
    $region18: #{tpu_custom_call.1} parent=1 // pred_check
      _
    $region19: #{tpu_custom_call.1} parent=1 // pred_check_branch
      %70 = sbr.rel (0) target = $region21
    $region20: #{tpu_custom_call.1} parent=1 // pred_region
      %72 = vsyncadd [#allocation5], 0
      %s74 = sshll.u32 [#allocation6], 4
      %s75 = int_to_ptr.vmem [resolvable:$true] %s74
      %s76 = sshll.u32 %s3, 4
      %s77 = int_to_ptr.hbm [resolvable:$true] %s76
      %79 = dma.vmem_to_hbm [thread:$0]  %s75, 16, %s77, [#allocation5]
    $region21: #{tpu_custom_call.1} parent=1 // pred_fallthru
      _
    // Predicated region
    $region22: #{tpu_custom_call.1} parent=1 // pred_check
      _
    $region23: #{tpu_custom_call.1} parent=1 // pred_check_branch
      %81 = sbr.rel (0) target = $region25
    $region24: #{tpu_custom_call.1} parent=1 // pred_region
      %83 = dma.done [#allocation5], 16
    $region25: #{tpu_custom_call.1} parent=1 // pred_fallthru
      _
    %84 = vsyncpa [#allocation4], 1
    %85 = vsyncpa [#allocation5], 1

</llo_original>
